<compile_context>
chip_gen: v7x
topology: tpu7x:2x2x1
jax: 0.10.0
libtpu: 0.0.40
codegen_flags: <defaults>
</compile_context>

<pallas_src>
import math

import jax
import jax.numpy as jnp
from jax.experimental import pallas as pl
from jax.experimental.pallas import tpu as pltpu

_SUBLANE = 8


def _round_up(x, m):
    return ((x + m - 1) // m) * m


def _leaky_relu(x, negative_slope=0.01):
    # slope in (0,1): maximum(x, slope*x) == where(x>=0, x, slope*x)
    return jnp.maximum(x, negative_slope * x)


def prediction_mlp_kernel(x_ref, w1_ref, b1_ref, w2_ref, b2_ref, w3_ref, b3_ref,
                          out_ref):
    # One batch tile per grid step. Accumulation is f32 on the MXU; all
    # elementwise math (bias add, leaky_relu) stays f32 (safe on v5e too).
    x = x_ref[...]                                                # [TM, K]
    h1 = jnp.dot(x, w1_ref[...],
                 preferred_element_type=jnp.float32) + b1_ref[...]
    h1 = _leaky_relu(h1)                                          # [TM, 64] f32
    h2 = jnp.dot(h1.astype(w2_ref.dtype), w2_ref[...],
                 preferred_element_type=jnp.float32) + b2_ref[...]
    h2 = _leaky_relu(h2)                                          # [TM, 32] f32
    out = jnp.dot(h2.astype(w3_ref.dtype), w3_ref[...],
                  preferred_element_type=jnp.float32) + b3_ref[...]
    out_ref[...] = out.astype(out_ref.dtype)                      # [TM, pred]


def _choose_tile(batch, block_rows):
    """Pick the batch tile: big enough to amortize per-step overhead, small
    enough that the grid has >=2 steps for v7x megacore when batch allows."""
    tm = min(int(block_rows), _round_up(batch, _SUBLANE))
    if batch >= 2 * _SUBLANE:
        # guarantee at least 2 grid steps so the parallel batch axis can
        # shard across the two v7x TensorCores (no-op on v5e/v6e).
        tm = min(tm, _round_up(pl.cdiv(batch, 2), _SUBLANE))
    tm = _round_up(tm, _SUBLANE)
    if tm > batch:
        # tiny batch: one full-extent block (legal: block dim == array dim),
        # avoids any edge-block masking.
        tm = batch
    return tm


def prediction_network_forward(sequence, params, *, block_rows=2048):
    """sequence: [B, state_dim * buffer_size] -> [B, prediction_dim] float32."""
    w1, b1, w2, b2, w3, b3 = params
    batch, seq_dim = sequence.shape
    h1_dim = w1.shape[1]
    h2_dim = w2.shape[1]
    pred_dim = w3.shape[1]

    # Stream x in the caller-provided dtype (bf16 halves the dominant read
    # stream when the producer already emits bf16); weights are tiny, so
    # casting them to match is free.  No wrapper-side cast/copy of x.
    compute_dtype = sequence.dtype
    w1c = w1.astype(compute_dtype)
    w2c = w2.astype(compute_dtype)
    w3c = w3.astype(compute_dtype)

    tm = _choose_tile(batch, block_rows)
    grid = (pl.cdiv(batch, tm),)
    resident = lambda i: (0, 0)   # full-array block, stays VMEM-resident

    out = pl.pallas_call(
        prediction_mlp_kernel,
        out_shape=jax.ShapeDtypeStruct((batch, pred_dim), jnp.float32),
        grid=grid,
        in_specs=[
            pl.BlockSpec((tm, seq_dim), lambda i: (i, 0)),     # x: batch-tiled
            pl.BlockSpec((seq_dim, h1_dim), resident),         # w1
            pl.BlockSpec((1, h1_dim), resident),               # b1
            pl.BlockSpec((h1_dim, h2_dim), resident),          # w2
            pl.BlockSpec((1, h2_dim), resident),               # b2
            pl.BlockSpec((h2_dim, pred_dim), resident),        # w3
            pl.BlockSpec((1, pred_dim), resident),             # b3
        ],
        out_specs=pl.BlockSpec((tm, pred_dim), lambda i: (i, 0)),
        compiler_params=pltpu.CompilerParams(
            dimension_semantics=("parallel",)),
    )(sequence, w1c, b1, w2c, b2, w3c, b3)

    return out


def _xavier_uniform(key, fan_in, fan_out):
    # matches nn.init.xavier_uniform_ (gain=1); produced in [in, out] layout
    limit = math.sqrt(6.0 / (fan_in + fan_out))
    return jax.random.uniform(key, (fan_in, fan_out), jnp.float32,
                              minval=-limit, maxval=limit)


def init_prediction_network(key, state_dim, prediction_dim=4, buffer_size=10):
    sequence_dim = state_dim * buffer_size
    k1, k2, k3 = jax.random.split(key, 3)
    w1 = _xavier_uniform(k1, sequence_dim, 64)
    b1 = jnp.zeros((1, 64), jnp.float32)
    w2 = _xavier_uniform(k2, 64, 32)
    b2 = jnp.zeros((1, 32), jnp.float32)
    w3 = _xavier_uniform(k3, 32, prediction_dim)
    b3 = jnp.zeros((1, prediction_dim), jnp.float32)
    return (w1, b1, w2, b2, w3, b3)


def _reference_forward(sequence, params):
    w1, b1, w2, b2, w3, b3 = params
    h1 = _leaky_relu(sequence @ w1 + b1)
    h2 = _leaky_relu(h1 @ w2 + b2)
    return h2 @ w3 + b3


if __name__ == "__main__":
    key = jax.random.PRNGKey(0)
    k_param, k_data = jax.random.split(key)

    state_dim = 8
    buffer_size = 10
    prediction_dim = 4
    batch = 2

    params = init_prediction_network(k_param, state_dim, prediction_dim,
                                     buffer_size)
    sequence = jax.random.normal(
        k_data, (batch, state_dim * buffer_size), jnp.float32)

    out = prediction_network_forward(sequence, params)
    out = jax.block_until_ready(out)

    ref = _reference_forward(sequence, params)
    assert out.shape == (batch, prediction_dim)
    assert jnp.allclose(out, ref, atol=1e-5, rtol=1e-5)

    # also exercise the multi-tile / edge-masked path with an awkward batch
    batch2 = 37
    seq2 = jax.random.normal(
        jax.random.PRNGKey(1), (batch2, state_dim * buffer_size), jnp.float32)
    out2 = jax.block_until_ready(
        prediction_network_forward(seq2, params, block_rows=16))
    ref2 = _reference_forward(seq2, params)
    assert out2.shape == (batch2, prediction_dim)
    assert jnp.allclose(out2, ref2, atol=1e-5, rtol=1e-5)

    print("KERNEL_OK")
</pallas_src>

<mosaic_0001>
module attributes {stable_mosaic.version = 11 : i64} {
  func.func @prediction_mlp_kernel(%arg0: i32, %arg1: memref<2x80xf32, #tpu.memory_space<vmem>>, %arg2: memref<80x64xf32, #tpu.memory_space<vmem>>, %arg3: memref<1x64xf32, #tpu.memory_space<vmem>>, %arg4: memref<64x32xf32, #tpu.memory_space<vmem>>, %arg5: memref<1x32xf32, #tpu.memory_space<vmem>>, %arg6: memref<32x4xf32, #tpu.memory_space<vmem>>, %arg7: memref<1x4xf32, #tpu.memory_space<vmem>>, %arg8: memref<2x4xf32, #tpu.memory_space<vmem>>) attributes {dimension_semantics = [#tpu.dimension_semantics<parallel>], iteration_bounds = array<i64: 1>, scalar_prefetch = 0 : i64, scratch_operands = 0 : i64, tpu.core_type = #tpu.core_type<tc>, window_params = [{transform_indices = @transform_0, window_bounds = array<i64: 2, 80>}, {pipeline_mode = #tpu.pipeline_mode<synchronous>, transform_indices = @transform_1, window_bounds = array<i64: 80, 64>}, {pipeline_mode = #tpu.pipeline_mode<synchronous>, transform_indices = @transform_2, window_bounds = array<i64: 1, 64>}, {pipeline_mode = #tpu.pipeline_mode<synchronous>, transform_indices = @transform_3, window_bounds = array<i64: 64, 32>}, {pipeline_mode = #tpu.pipeline_mode<synchronous>, transform_indices = @transform_4, window_bounds = array<i64: 1, 32>}, {pipeline_mode = #tpu.pipeline_mode<synchronous>, transform_indices = @transform_5, window_bounds = array<i64: 32, 4>}, {pipeline_mode = #tpu.pipeline_mode<synchronous>, transform_indices = @transform_6, window_bounds = array<i64: 1, 4>}, {transform_indices = @transform_7, window_bounds = array<i64: 2, 4>}]} {
    %c0 = arith.constant 0 : index
    %c0_0 = arith.constant 0 : index
    %0 = vector.load %arg1[%c0, %c0_0] : memref<2x80xf32, #tpu.memory_space<vmem>>, vector<2x80xf32>
    %c0_1 = arith.constant 0 : index
    %c0_2 = arith.constant 0 : index
    %1 = vector.load %arg2[%c0_1, %c0_2] : memref<80x64xf32, #tpu.memory_space<vmem>>, vector<80x64xf32>
    %cst = arith.constant dense<0.000000e+00> : vector<2x64xf32>
    %2 = tpu.matmul %0, %1, %cst {dimension_numbers = #tpu.dot_dimension_numbers<[1], [0], [0], [1], [0, 0, 1, 1], [], []>} : vector<2x80xf32>, vector<80x64xf32>, vector<2x64xf32> -> vector<2x64xf32>
    %c0_3 = arith.constant 0 : index
    %c0_4 = arith.constant 0 : index
    %3 = vector.load %arg3[%c0_3, %c0_4] : memref<1x64xf32, #tpu.memory_space<vmem>>, vector<1x64xf32>
    %4 = vector.broadcast %3 : vector<1x64xf32> to vector<2x64xf32>
    %5 = arith.addf %2, %4 : vector<2x64xf32>
    %cst_5 = arith.constant 0.00999999977 : f32
    %6 = vector.broadcast %cst_5 : f32 to vector<2x64xf32>
    %7 = arith.mulf %6, %5 : vector<2x64xf32>
    %8 = arith.maximumf %5, %7 : vector<2x64xf32>
    %c0_6 = arith.constant 0 : index
    %c0_7 = arith.constant 0 : index
    %9 = vector.load %arg4[%c0_6, %c0_7] : memref<64x32xf32, #tpu.memory_space<vmem>>, vector<64x32xf32>
    %cst_8 = arith.constant dense<0.000000e+00> : vector<2x32xf32>
    %10 = tpu.matmul %8, %9, %cst_8 {dimension_numbers = #tpu.dot_dimension_numbers<[1], [0], [0], [1], [0, 0, 1, 1], [], []>} : vector<2x64xf32>, vector<64x32xf32>, vector<2x32xf32> -> vector<2x32xf32>
    %c0_9 = arith.constant 0 : index
    %c0_10 = arith.constant 0 : index
    %11 = vector.load %arg5[%c0_9, %c0_10] : memref<1x32xf32, #tpu.memory_space<vmem>>, vector<1x32xf32>
    %12 = vector.broadcast %11 : vector<1x32xf32> to vector<2x32xf32>
    %13 = arith.addf %10, %12 : vector<2x32xf32>
    %cst_11 = arith.constant 0.00999999977 : f32
    %14 = vector.broadcast %cst_11 : f32 to vector<2x32xf32>
    %15 = arith.mulf %14, %13 : vector<2x32xf32>
    %16 = arith.maximumf %13, %15 : vector<2x32xf32>
    %c0_12 = arith.constant 0 : index
    %c0_13 = arith.constant 0 : index
    %17 = vector.load %arg6[%c0_12, %c0_13] : memref<32x4xf32, #tpu.memory_space<vmem>>, vector<32x4xf32>
    %cst_14 = arith.constant dense<0.000000e+00> : vector<2x4xf32>
    %18 = tpu.matmul %16, %17, %cst_14 {dimension_numbers = #tpu.dot_dimension_numbers<[1], [0], [0], [1], [0, 0, 1, 1], [], []>} : vector<2x32xf32>, vector<32x4xf32>, vector<2x4xf32> -> vector<2x4xf32>
    %c0_15 = arith.constant 0 : index
    %c0_16 = arith.constant 0 : index
    %19 = vector.load %arg7[%c0_15, %c0_16] : memref<1x4xf32, #tpu.memory_space<vmem>>, vector<1x4xf32>
    %20 = vector.broadcast %19 : vector<1x4xf32> to vector<2x4xf32>
    %21 = arith.addf %18, %20 : vector<2x4xf32>
    %c0_17 = arith.constant 0 : index
    %c0_18 = arith.constant 0 : index
    %22 = vector.load %arg8[%c0_17, %c0_18] : memref<2x4xf32, #tpu.memory_space<vmem>>, vector<2x4xf32>
    tpu.vector_store %arg8[%c0_17, %c0_18], %21 {strides = array<i32>} : memref<2x4xf32, #tpu.memory_space<vmem>>, vector<2x4xf32>,
    return
  }
  func.func @transform_0(%arg0: i32) -> (i32, i32) {
    %c0_i32 = arith.constant 0 : i32
    %c0_i32_0 = arith.constant 0 : i32
    return %arg0, %c0_i32 : i32, i32
  }
  func.func @transform_1(%arg0: i32) -> (i32, i32) {
    %c0_i32 = arith.constant 0 : i32
    %c0_i32_0 = arith.constant 0 : i32
    %c0_i32_1 = arith.constant 0 : i32
    return %c0_i32, %c0_i32_0 : i32, i32
  }
  func.func @transform_2(%arg0: i32) -> (i32, i32) {
    %c0_i32 = arith.constant 0 : i32
    %c0_i32_0 = arith.constant 0 : i32
    %c0_i32_1 = arith.constant 0 : i32
    return %c0_i32, %c0_i32_0 : i32, i32
  }
  func.func @transform_3(%arg0: i32) -> (i32, i32) {
    %c0_i32 = arith.constant 0 : i32
    %c0_i32_0 = arith.constant 0 : i32
    %c0_i32_1 = arith.constant 0 : i32
    return %c0_i32, %c0_i32_0 : i32, i32
  }
  func.func @transform_4(%arg0: i32) -> (i32, i32) {
    %c0_i32 = arith.constant 0 : i32
    %c0_i32_0 = arith.constant 0 : i32
    %c0_i32_1 = arith.constant 0 : i32
    return %c0_i32, %c0_i32_0 : i32, i32
  }
  func.func @transform_5(%arg0: i32) -> (i32, i32) {
    %c0_i32 = arith.constant 0 : i32
    %c0_i32_0 = arith.constant 0 : i32
    %c0_i32_1 = arith.constant 0 : i32
    return %c0_i32, %c0_i32_0 : i32, i32
  }
  func.func @transform_6(%arg0: i32) -> (i32, i32) {
    %c0_i32 = arith.constant 0 : i32
    %c0_i32_0 = arith.constant 0 : i32
    %c0_i32_1 = arith.constant 0 : i32
    return %c0_i32, %c0_i32_0 : i32, i32
  }
  func.func @transform_7(%arg0: i32) -> (i32, i32) {
    %c0_i32 = arith.constant 0 : i32
    %c0_i32_0 = arith.constant 0 : i32
    return %arg0, %c0_i32 : i32, i32
  }
}

</mosaic_0001>

<llo_original>
// kernel: tpu_custom_call.1
$region0: #{tpu_custom_call.1}
  #allocation0 [shape = 'u32[]', space=smem, size = 0x4, offset = 0x4, fixed_abs, tag = 'smem constant byte address 0x4 - core index']
  #allocation1 [shape = 'u32[144,128]{1,0:T(1,128)}', space=vmem, size = 0x12000, scoped, tag = 'internal scratch']
  %s0 = inlined_call_operand.vmem [shape: f32[2,80], index: 0, kind: input, shape index: {}]
  %s1 = inlined_call_operand.vmem [shape: f32[80,64], index: 1, kind: input, shape index: {}]
  %s2 = inlined_call_operand.vmem [shape: f32[1,64], index: 2, kind: input, shape index: {}]
  %s3 = inlined_call_operand.vmem [shape: f32[64,32], index: 3, kind: input, shape index: {}]
  %s4 = inlined_call_operand.vmem [shape: f32[1,32], index: 4, kind: input, shape index: {}]
  %s5 = inlined_call_operand.vmem [shape: f32[32,4], index: 5, kind: input, shape index: {}]
  %s6 = inlined_call_operand.vmem [shape: f32[1,4], index: 6, kind: input, shape index: {}]
  %s7 = inlined_call_operand.hbm [shape: f32[2,4], index: 7, kind: output, shape index: {}]
  %s8 = sld [smem:[#allocation0]]
  $region38: #{tpu_custom_call.1} parent=0
    _
  %s10 = ssub.s32 1, %s8
  %s11 = scalar_select 0, %s10, %s8
  $region1: #{tpu_custom_call.1} parent=0
    #allocation2 [shape = 'u8[1024]{0}', space=vmem, size = 0x400, scoped, tag = 'output window, operand 0, single buffered']
    #allocation3 [shape = 's32[1]{0}', space=sflag, size = 0x4, scoped, tag = 'scoped memory for tpu_custom_call.1']
    %12 = vsyncpa [#allocation3], 0
    // Predicated region
    $region2: #{tpu_custom_call.1} parent=1 // pred_check
      _
    $region3: #{tpu_custom_call.1} parent=1 // pred_check_branch
      %14 = sbr.rel (0) target = $region5
    $region4: #{tpu_custom_call.1} parent=1 // pred_region
      _
    $region5: #{tpu_custom_call.1} parent=1 // pred_fallthru
      _
    // Predicated region
    $region6: #{tpu_custom_call.1} parent=1 // pred_check
      _
    $region7: #{tpu_custom_call.1} parent=1 // pred_check_branch
      %16 = sbr.rel (0) target = $region9
    $region8: #{tpu_custom_call.1} parent=1 // pred_region
      _
    $region9: #{tpu_custom_call.1} parent=1 // pred_fallthru
      _
    // Predicated region
    $region10: #{tpu_custom_call.1} parent=1 // pred_check
      _
    $region11: #{tpu_custom_call.1} parent=1 // pred_check_branch
      %18 = sbr.rel (0) target = $region13
    $region12: #{tpu_custom_call.1} parent=1 // pred_region
      _
    $region13: #{tpu_custom_call.1} parent=1 // pred_fallthru
      _
    // Predicated region
    $region14: #{tpu_custom_call.1} parent=1 // pred_check
      _
    $region15: #{tpu_custom_call.1} parent=1 // pred_check_branch
      %20 = sbr.rel (0) target = $region17
    $region16: #{tpu_custom_call.1} parent=1 // pred_region
      _
    $region17: #{tpu_custom_call.1} parent=1 // pred_fallthru
      _
    // Predicated region
    $region18: #{tpu_custom_call.1} parent=1 // pred_check
      _
    $region19: #{tpu_custom_call.1} parent=1 // pred_check_branch
      %22 = sbr.rel (0) target = $region21
    $region20: #{tpu_custom_call.1} parent=1 // pred_region
      _
    $region21: #{tpu_custom_call.1} parent=1 // pred_fallthru
      _
    // Predicated region
    $region22: #{tpu_custom_call.1} parent=1 // pred_check
      _
    $region23: #{tpu_custom_call.1} parent=1 // pred_check_branch
      %24 = sbr.rel (0) target = $region25
    $region24: #{tpu_custom_call.1} parent=1 // pred_region
      _
    $region25: #{tpu_custom_call.1} parent=1 // pred_fallthru
      _
    // Predicated region
    $region26: #{tpu_custom_call.1} parent=1 // pred_check
      _
    $region27: #{tpu_custom_call.1} parent=1 // pred_check_branch
      %26 = sbr.rel (0) target = $region29
    $region28: #{tpu_custom_call.1} parent=1 // pred_region
      _
    $region29: #{tpu_custom_call.1} parent=1 // pred_fallthru
      _
    %v27 = vld [vmem:[%s0] sm:$0x3]
    %v28 = vld [vmem:[%s1] sm:$0xff]
    %v29 = vld [vmem:[%s1 + $0x8] sm:$0xff]
    %v30 = vld [vmem:[%s1 + $0x10] sm:$0xff]
    %v31 = vld [vmem:[%s1 + $0x18] sm:$0xff]
    %v32 = vld [vmem:[%s1 + $0x20] sm:$0xff]
    %v33 = vld [vmem:[%s1 + $0x28] sm:$0xff]
    %v34 = vld [vmem:[%s1 + $0x30] sm:$0xff]
    %v35 = vld [vmem:[%s1 + $0x38] sm:$0xff]
    %v36 = vld [vmem:[%s1 + $0x40] sm:$0xff]
    %v37 = vld [vmem:[%s1 + $0x48] sm:$0xff]
    %v38 = vld [vmem:[%s2] sm:$0x1]
    %v40 = vlaneseq
    %v41 = vshrl.u32 %v40, 7
    %v42 = vsub.s32 0, %v41
    %v43 = vrot.slane %v38, %v42
    %vm45 = vcmask 654336
    %v47 = vsel %vm45, %v27, 0
    %49 = vmatprep.subr.mxu0 0.0
    %50 = vmatpush1.msra.mxu0 %v28
    %51 = vmatprep.subr.mxu0 0.0
    %52 = vmatpush1.msra.mxu0 %v29
    %53 = vmatprep.subr.mxu0 0.0
    %54 = vmatpush1.msra.mxu0 %v30
    %55 = vmatprep.subr.mxu0 0.0
    %56 = vmatpush1.msra.mxu0 %v31
    %57 = vmatprep.subr.mxu0 0.0
    %58 = vmatpush1.msra.mxu0 %v32
    %59 = vmatprep.subr.mxu0 0.0
    %60 = vmatpush1.msra.mxu0 %v33
    %61 = vmatprep.subr.mxu0 0.0
    %62 = vmatpush1.msra.mxu0 %v34
    %63 = vmatprep.subr.mxu0 0.0
    %64 = vmatpush1.msra.mxu0 %v35
    %65 = vmatprep.subr.mxu0 0.0
    %66 = vmatpush1.msra.mxu0 %v36
    %67 = vmatprep.subr.mxu0 0.0
    %68 = vmatpush1.msra.mxu0 %v37
    %69 = vmatprep.subr.mxu0 0.0
    %70 = vmatpush1.msra.mxu0 0.0
    %71 = vmatprep.subr.mxu0 0.0
    %72 = vmatpush1.msra.mxu0 0.0
    %73 = vmatprep.subr.mxu0 0.0
    %74 = vmatpush1.msra.mxu0 0.0
    %75 = vmatprep.subr.mxu0 0.0
    %76 = vmatpush1.msra.mxu0 0.0
    %77 = vmatprep.subr.mxu0 0.0
    %78 = vmatpush1.msra.mxu0 0.0
    %79 = vmatprep.subr.mxu0 0.0
    %80 = vmatpush1.msra.mxu0 0.0
    %81 = vmatprep.subr.mxu0 0.0
    %82 = vmatpush1.msra.mxu0 0.0
    %83 = vmatprep.subr.mxu0 0.0
    %84 = vmatpush1.msra.mxu0 0.0
    %85 = vmatprep.subr.mxu0 0.0
    %86 = vmatpush1.msra.mxu0 0.0
    %87 = vmatprep.subr.mxu0 0.0
    %88 = vmatpush1.msra.mxu0 0.0
    %89 = vmatprep.subr.mxu0 0.0
    %90 = vmatpush1.msra.mxu0 0.0
    %91 = vmatprep.subr.mxu0 0.0
    %92 = vmatpush1.msra.mxu0 0.0
    %93 = vmatprep.subr.mxu0 0.0
    %94 = vmatpush1.msra.mxu0 0.0
    %95 = vmatprep.subr.mxu0 0.0
    %96 = vmatpush1.msra.mxu0 0.0
    %97 = vmatprep.subr.mxu0 0.0
    %98 = vmatpush1.msra.mxu0 0.0
    %99 = vmatprep.subr.mxu0 0.0
    %100 = vmatpush1.msra.mxu0 0.0
    %101 = vmatprep.subr.mxu0 0.0
    %102 = vmatpush1.msra.mxu0 0.0
    %103 = vmatprep.subr.mxu0 0.0
    %104 = vmatpush1.msra.mxu0 0.0
    %105 = vmatprep.subr.mxu0 0.0
    %106 = vmatpush1.msra.mxu0 0.0
    %107 = vmatprep.subr.mxu0 0.0
    %108 = vmatpush1.msra.mxu0 0.0
    %109 = vmatprep.subr.mxu0 0.0
    %110 = vmatpush1.msra.mxu0 0.0
    %111 = vmatprep.subr.mxu0 0.0
    %112 = vmatpush1.msra.mxu0 0.0
    %113 = vmatprep.mubr.f32.mxu0 0.0
    %114 = vmatmul.mubr.f32.gmra.mrb[0].mxu0 %v47
    %v115 = vpop.f32.mrb[0].mxu0
    %v116 = vadd.f32 %v43, %v115
    %v117 = vpop.f32.mrb[0].mxu0
    %118 = vdwg.mxu0
    %v119 = vmul.f32 %v116, 0.01
    %v120 = vmax.f32 %v116, %v119
    %v121 = vld [vmem:[%s3] sm:$0xff]
    %v122 = vld [vmem:[%s3 + $0x8] sm:$0xff]
    %v123 = vld [vmem:[%s3 + $0x10] sm:$0xff]
    %v124 = vld [vmem:[%s3 + $0x18] sm:$0xff]
    %v125 = vld [vmem:[%s3 + $0x20] sm:$0xff]
    %v126 = vld [vmem:[%s3 + $0x28] sm:$0xff]
    %v127 = vld [vmem:[%s3 + $0x30] sm:$0xff]
    %v128 = vld [vmem:[%s3 + $0x38] sm:$0xff]
    %v129 = vld [vmem:[%s4] sm:$0x1]
    %v131 = vlaneseq
    %v132 = vshrl.u32 %v131, 7
    %v133 = vsub.s32 0, %v132
    %v134 = vrot.slane %v129, %v133
    %vm136 = vcmask 523264
    %v138 = vsel %vm136, %v120, 0
    %140 = vmatprep.subr.mxu0 0.0
    %141 = vmatpush1.msra.mxu0 %v121
    %142 = vmatprep.subr.mxu0 0.0
    %143 = vmatpush1.msra.mxu0 %v122
    %144 = vmatprep.subr.mxu0 0.0
    %145 = vmatpush1.msra.mxu0 %v123
    %146 = vmatprep.subr.mxu0 0.0
    %147 = vmatpush1.msra.mxu0 %v124
    %148 = vmatprep.subr.mxu0 0.0
    %149 = vmatpush1.msra.mxu0 %v125
    %150 = vmatprep.subr.mxu0 0.0
    %151 = vmatpush1.msra.mxu0 %v126
    %152 = vmatprep.subr.mxu0 0.0
    %153 = vmatpush1.msra.mxu0 %v127
    %154 = vmatprep.subr.mxu0 0.0
    %155 = vmatpush1.msra.mxu0 %v128
    %156 = vmatprep.subr.mxu0 0.0
    %157 = vmatpush1.msra.mxu0 0.0
    %158 = vmatprep.subr.mxu0 0.0
    %159 = vmatpush1.msra.mxu0 0.0
    %160 = vmatprep.subr.mxu0 0.0
    %161 = vmatpush1.msra.mxu0 0.0
    %162 = vmatprep.subr.mxu0 0.0
    %163 = vmatpush1.msra.mxu0 0.0
    %164 = vmatprep.subr.mxu0 0.0
    %165 = vmatpush1.msra.mxu0 0.0
    %166 = vmatprep.subr.mxu0 0.0
    %167 = vmatpush1.msra.mxu0 0.0
    %168 = vmatprep.subr.mxu0 0.0
    %169 = vmatpush1.msra.mxu0 0.0
    %170 = vmatprep.subr.mxu0 0.0
    %171 = vmatpush1.msra.mxu0 0.0
    %172 = vmatprep.subr.mxu0 0.0
    %173 = vmatpush1.msra.mxu0 0.0
    %174 = vmatprep.subr.mxu0 0.0
    %175 = vmatpush1.msra.mxu0 0.0
    %176 = vmatprep.subr.mxu0 0.0
    %177 = vmatpush1.msra.mxu0 0.0
    %178 = vmatprep.subr.mxu0 0.0
    %179 = vmatpush1.msra.mxu0 0.0
    %180 = vmatprep.subr.mxu0 0.0
    %181 = vmatpush1.msra.mxu0 0.0
    %182 = vmatprep.subr.mxu0 0.0
    %183 = vmatpush1.msra.mxu0 0.0
    %184 = vmatprep.subr.mxu0 0.0
    %185 = vmatpush1.msra.mxu0 0.0
    %186 = vmatprep.subr.mxu0 0.0
    %187 = vmatpush1.msra.mxu0 0.0
    %188 = vmatprep.subr.mxu0 0.0
    %189 = vmatpush1.msra.mxu0 0.0
    %190 = vmatprep.subr.mxu0 0.0
    %191 = vmatpush1.msra.mxu0 0.0
    %192 = vmatprep.subr.mxu0 0.0
    %193 = vmatpush1.msra.mxu0 0.0
    %194 = vmatprep.subr.mxu0 0.0
    %195 = vmatpush1.msra.mxu0 0.0
    %196 = vmatprep.subr.mxu0 0.0
    %197 = vmatpush1.msra.mxu0 0.0
    %198 = vmatprep.subr.mxu0 0.0
    %199 = vmatpush1.msra.mxu0 0.0
    %200 = vmatprep.subr.mxu0 0.0
    %201 = vmatpush1.msra.mxu0 0.0
    %202 = vmatprep.subr.mxu0 0.0
    %203 = vmatpush1.msra.mxu0 0.0
    %204 = vmatprep.mubr.f32.mxu0 0.0
    %205 = vmatmul.mubr.f32.gmra.mrb[0].mxu0 %v138
    %v206 = vpop.f32.mrb[0].mxu0
    %v207 = vadd.f32 %v134, %v206
    %v208 = vpop.f32.mrb[0].mxu0
    %209 = vdwg.mxu0
    %v210 = vmul.f32 %v207, 0.01
    %v211 = vmax.f32 %v207, %v210
    %v212 = vld [vmem:[%s5] sm:$0xff]
    %v213 = vld [vmem:[%s5 + $0x8] sm:$0xff]
    %v214 = vld [vmem:[%s5 + $0x10] sm:$0xff]
    %v215 = vld [vmem:[%s5 + $0x18] sm:$0xff]
    %v216 = vld [vmem:[%s6] sm:$0x1]
    %v218 = vlaneseq
    %v219 = vshrl.u32 %v218, 7
    %v220 = vsub.s32 0, %v219
    %v221 = vrot.slane %v216, %v220
    %vm223 = vcmask 261120
    %v225 = vsel %vm223, %v211, 0
    %227 = vmatprep.subr.mxu0 0.0
    %228 = vmatpush1.msra.mxu0 %v212
    %229 = vmatprep.subr.mxu0 0.0
    %230 = vmatpush1.msra.mxu0 %v213
    %231 = vmatprep.subr.mxu0 0.0
    %232 = vmatpush1.msra.mxu0 %v214
    %233 = vmatprep.subr.mxu0 0.0
    %234 = vmatpush1.msra.mxu0 %v215
    %235 = vmatprep.subr.mxu0 0.0
    %236 = vmatpush1.msra.mxu0 0.0
    %237 = vmatprep.subr.mxu0 0.0
    %238 = vmatpush1.msra.mxu0 0.0
    %239 = vmatprep.subr.mxu0 0.0
    %240 = vmatpush1.msra.mxu0 0.0
    %241 = vmatprep.subr.mxu0 0.0
    %242 = vmatpush1.msra.mxu0 0.0
    %243 = vmatprep.subr.mxu0 0.0
    %244 = vmatpush1.msra.mxu0 0.0
    %245 = vmatprep.subr.mxu0 0.0
    %246 = vmatpush1.msra.mxu0 0.0
    %247 = vmatprep.subr.mxu0 0.0
    %248 = vmatpush1.msra.mxu0 0.0
    %249 = vmatprep.subr.mxu0 0.0
    %250 = vmatpush1.msra.mxu0 0.0
    %251 = vmatprep.subr.mxu0 0.0
    %252 = vmatpush1.msra.mxu0 0.0
    %253 = vmatprep.subr.mxu0 0.0
    %254 = vmatpush1.msra.mxu0 0.0
    %255 = vmatprep.subr.mxu0 0.0
    %256 = vmatpush1.msra.mxu0 0.0
    %257 = vmatprep.subr.mxu0 0.0
    %258 = vmatpush1.msra.mxu0 0.0
    %259 = vmatprep.subr.mxu0 0.0
    %260 = vmatpush1.msra.mxu0 0.0
    %261 = vmatprep.subr.mxu0 0.0
    %262 = vmatpush1.msra.mxu0 0.0
    %263 = vmatprep.subr.mxu0 0.0
    %264 = vmatpush1.msra.mxu0 0.0
    %265 = vmatprep.subr.mxu0 0.0
    %266 = vmatpush1.msra.mxu0 0.0
    %267 = vmatprep.subr.mxu0 0.0
    %268 = vmatpush1.msra.mxu0 0.0
    %269 = vmatprep.subr.mxu0 0.0
    %270 = vmatpush1.msra.mxu0 0.0
    %271 = vmatprep.subr.mxu0 0.0
    %272 = vmatpush1.msra.mxu0 0.0
    %273 = vmatprep.subr.mxu0 0.0
    %274 = vmatpush1.msra.mxu0 0.0
    %275 = vmatprep.subr.mxu0 0.0
    %276 = vmatpush1.msra.mxu0 0.0
    %277 = vmatprep.subr.mxu0 0.0
    %278 = vmatpush1.msra.mxu0 0.0
    %279 = vmatprep.subr.mxu0 0.0
    %280 = vmatpush1.msra.mxu0 0.0
    %281 = vmatprep.subr.mxu0 0.0
    %282 = vmatpush1.msra.mxu0 0.0
    %283 = vmatprep.subr.mxu0 0.0
    %284 = vmatpush1.msra.mxu0 0.0
    %285 = vmatprep.subr.mxu0 0.0
    %286 = vmatpush1.msra.mxu0 0.0
    %287 = vmatprep.subr.mxu0 0.0
    %288 = vmatpush1.msra.mxu0 0.0
    %289 = vmatprep.subr.mxu0 0.0
    %290 = vmatpush1.msra.mxu0 0.0
    %291 = vmatprep.mubr.f32.mxu0 0.0
    %292 = vmatmul.mubr.f32.gmra.mrb[0].mxu0 %v225
    %v293 = vpop.f32.mrb[0].mxu0
    %v294 = vadd.f32 %v221, %v293
    %v295 = vpop.f32.mrb[0].mxu0
    %296 = vdwg.mxu0
    %vm297 = vcmask 25600
    %298 = vst.msk [vmem:[#allocation2] sm:$0x3] %vm297, %v294
    // Predicated region
    $region30: #{tpu_custom_call.1} parent=1 // pred_check
      _
    $region31: #{tpu_custom_call.1} parent=1 // pred_check_branch
      %300 = sbr.rel (0) target = $region33
    $region32: #{tpu_custom_call.1} parent=1 // pred_region
      %s302 = ssub.s32 32, 32
      %303 = vsyncadd [#allocation3], %s302
      %s305 = sshll.u32 [#allocation2], 4
      %s306 = int_to_ptr.vmem [resolvable:$true] %s305
      %308 = dma.vmem_to_hbm [thread:$0]  %s306, 32, %s7, [#allocation3]
    $region33: #{tpu_custom_call.1} parent=1 // pred_fallthru
      _
    // Predicated region
    $region34: #{tpu_custom_call.1} parent=1 // pred_check
      _
    $region35: #{tpu_custom_call.1} parent=1 // pred_check_branch
      %310 = sbr.rel (0) target = $region37
    $region36: #{tpu_custom_call.1} parent=1 // pred_region
      %311 = dma.done [#allocation3], 32
    $region37: #{tpu_custom_call.1} parent=1 // pred_fallthru
      _
    %312 = vsyncpa [#allocation3], 1

</llo_original>
